<compile_context>
chip_gen: v5e
topology: v5e:2x2
jax: 0.10.0
libtpu: 0.0.40
codegen_flags: <defaults>
</compile_context>

<pallas_src>
import functools

import jax
import jax.numpy as jnp
from jax.experimental import pallas as pl
from jax.experimental.pallas import tpu as pltpu


def _round_up(x, m):
    return (x + m - 1) // m * m


def _cdiv(a, b):
    return (a + b - 1) // b


def _unify_proto_kernel(x_ref, w_ref, o_ref, *, compute_dtype):
    # x_ref: (1, C, t_hw)    x.dtype (f32 in HBM; cast in-kernel, uses spare VPU slots)
    # w_ref: (tn, C)         weight.dtype
    # o_ref: (1, tn, t_hw)   out_dtype
    x = x_ref[0].astype(compute_dtype)
    w = w_ref[...].astype(compute_dtype)
    o_ref[0] = jnp.dot(w, x, preferred_element_type=jnp.float32).astype(o_ref.dtype)


def unify_prototype_forward(x, weight, datasets_id=None, M=None, *,
                            compute_dtype=None, out_dtype=None):
    """UnifyPrototype forward: einsum('bchw,nc->bnhw', x, weight).

    x      : (B, C, H, W)
    weight : (N, C)            (num_unify_class x nfeat)
    datasets_id, M : accepted for API parity with the PyTorch module; the
                     forward does not use them (they are backward-only inputs).
    compute_dtype : dtype fed to the MXU (default: x.dtype, i.e. exact parity).
    out_dtype     : stored output dtype (default: x.dtype). f32 accumulation
                    always happens in-register; cast on store.
    Returns (B, N, H, W) in out_dtype.
    """
    # TODO(synk): the custom autograd backward (per-dataset gradient masking by
    # M keyed on datasets_id) is not implemented; forward semantics only.
    del datasets_id, M

    b, c, h, w = x.shape
    n_cls, c_w = weight.shape
    assert c_w == c, "weight feature dim must match x channel dim"

    compute_dtype = x.dtype if compute_dtype is None else compute_dtype
    out_dtype = x.dtype if out_dtype is None else out_dtype

    hw = h * w

    # ---- class tile ---------------------------------------------------------
    # Single class tile for realistic prototype counts so x is read once.
    # 16-aligned so both f32 and bf16 weight/output tiles sit in native tiling.
    if n_cls <= 1024:
        tn = _round_up(n_cls, 16)
    else:
        tn = 256
    n_tiles = _cdiv(n_cls, tn)

    # ---- spatial tile -------------------------------------------------------
    # Lane-dense 512-wide tiles; the last (partial) block is masked by Pallas,
    # no wrapper-side padding of x or the output.
    t_hw = min(512, _round_up(hw, 128))
    s_tiles = _cdiv(hw, t_hw)

    # v7x megacore: guarantee >= 2 parallel grid units when the problem allows,
    # so the two TensorCores both get work (splitting spatial is free: no
    # cross-step reduction exists, C is contracted inside one block).
    if b * n_tiles * s_tiles < 2 and hw > 128:
        t_hw = max(128, _round_up(_cdiv(hw, 2), 128))
        s_tiles = _cdiv(hw, t_hw)

    x_flat = x.reshape(b, c, hw)  # contiguous view, no copy / no pad / no cast

    grid = (b, s_tiles, n_tiles)  # class axis innermost -> x block index is
                                  # constant there and Pallas skips the re-fetch.

    kernel = functools.partial(_unify_proto_kernel, compute_dtype=compute_dtype)

    out_flat = pl.pallas_call(
        kernel,
        out_shape=jax.ShapeDtypeStruct((b, n_cls, hw), out_dtype),
        grid=grid,
        in_specs=[
            # x: one batch element, full channel (contraction) dim, one spatial tile.
            pl.BlockSpec((1, c, t_hw), lambda bi, si, ni: (bi, 0, si)),
            # weight: one class tile, full channel dim.
            pl.BlockSpec((tn, c), lambda bi, si, ni: (ni, 0)),
        ],
        out_specs=pl.BlockSpec((1, tn, t_hw), lambda bi, si, ni: (bi, ni, si)),
        compiler_params=pltpu.CompilerParams(
            # No reduction across the grid: all axes parallel (megacore sharding).
            dimension_semantics=("parallel", "parallel", "parallel"),
        ),
        # Advisory: low FLOPs, large bytes -> schedule as memory-bound.
        cost_estimate=pl.CostEstimate(
            flops=2 * b * n_cls * c * hw,
            transcendentals=0,
            bytes_accessed=(x.size * x.dtype.itemsize
                            + weight.size * weight.dtype.itemsize
                            + b * n_cls * hw * jnp.dtype(out_dtype).itemsize),
        ),
    )(x_flat, weight)

    return out_flat.reshape(b, n_cls, h, w)


if __name__ == "__main__":
    # Shapes consistent with the module:
    #   n_datasets=2, dataset cats (19, 21) -> total 40, unify_ratio 0.75
    #   -> num_unify_class = 30 ; nfeat = 32 ; feature map 2 x 32 x 16 x 16.
    B, C, H, W = 2, 32, 16, 16
    N_DATASETS = 2
    NUM_UNIFY = 30

    key = jax.random.PRNGKey(0)
    k_x, k_w = jax.random.split(key)

    x = jax.random.normal(k_x, (B, C, H, W), jnp.float32)
    weight = jax.random.normal(k_w, (NUM_UNIFY, C), jnp.float32)  # torch.randn init
    datasets_id = jnp.array([0, 1], jnp.int32)     # backward-only in PyTorch
    M = jnp.ones((N_DATASETS, C), jnp.float32)     # backward-only in PyTorch

    out = unify_prototype_forward(x, weight, datasets_id, M)
    out = jax.block_until_ready(out)
    assert out.shape == (B, NUM_UNIFY, H, W)
    assert out.dtype == x.dtype

    ref = jnp.einsum("bchw,nc->bnhw", x, weight,
                     precision=jax.lax.Precision.HIGHEST)
    assert jnp.allclose(out, ref, atol=3e-2, rtol=3e-2), \
        "kernel mismatch vs f32 reference"

    # Exercise the unpadded edge-masking path: HW not a multiple of 128
    # (partial spatial block) and partial class tile, no wrapper padding.
    H2, W2 = 10, 10
    x2 = jax.random.normal(jax.random.PRNGKey(1), (B, C, H2, W2), jnp.float32)
    out2 = jax.block_until_ready(
        unify_prototype_forward(x2, weight, datasets_id, M))
    ref2 = jnp.einsum("bchw,nc->bnhw", x2, weight,
                      precision=jax.lax.Precision.HIGHEST)
    assert out2.shape == (B, NUM_UNIFY, H2, W2)
    assert jnp.allclose(out2, ref2, atol=3e-2, rtol=3e-2), \
        "kernel mismatch vs f32 reference (partial-block case)"

    print("KERNEL_OK")
</pallas_src>

<mosaic_0001>
module attributes {stable_mosaic.version = 11 : i64} {
  func.func @_unify_proto_kernel(%arg0: i32, %arg1: i32, %arg2: i32, %arg3: memref<1x32x256xf32, #tpu.memory_space<vmem>>, %arg4: memref<32x32xf32, #tpu.memory_space<vmem>>, %arg5: memref<1x32x256xf32, #tpu.memory_space<vmem>>) attributes {dimension_semantics = [#tpu.dimension_semantics<parallel>, #tpu.dimension_semantics<parallel>, #tpu.dimension_semantics<parallel>], iteration_bounds = array<i64: 2, 1, 1>, scalar_prefetch = 0 : i64, scratch_operands = 0 : i64, tpu.core_type = #tpu.core_type<tc>, window_params = [{transform_indices = @transform_0, window_bounds = array<i64: 1, 32, 256>}, {transform_indices = @transform_1, window_bounds = array<i64: 32, 32>}, {transform_indices = @transform_2, window_bounds = array<i64: 1, 32, 256>}]} {
    %c0 = arith.constant 0 : index
    %c0_0 = arith.constant 0 : index
    %c0_1 = arith.constant 0 : index
    %0 = vector.load %arg3[%c0, %c0_0, %c0_1] : memref<1x32x256xf32, #tpu.memory_space<vmem>>, vector<1x32x256xf32>
    %1 = vector.shape_cast %0 : vector<1x32x256xf32> to vector<32x256xf32>
    %c0_2 = arith.constant 0 : index
    %c0_3 = arith.constant 0 : index
    %2 = vector.load %arg4[%c0_2, %c0_3] : memref<32x32xf32, #tpu.memory_space<vmem>>, vector<32x32xf32>
    %cst = arith.constant dense<0.000000e+00> : vector<32x256xf32>
    %3 = tpu.matmul %2, %1, %cst {dimension_numbers = #tpu.dot_dimension_numbers<[1], [0], [0], [1], [0, 0, 1, 1], [], []>} : vector<32x32xf32>, vector<32x256xf32>, vector<32x256xf32> -> vector<32x256xf32>
    %c0_4 = arith.constant 0 : index
    %c0_5 = arith.constant 0 : index
    %c0_6 = arith.constant 0 : index
    %4 = vector.load %arg5[%c0_4, %c0_5, %c0_6] : memref<1x32x256xf32, #tpu.memory_space<vmem>>, vector<1x32x256xf32>
    %5 = vector.shape_cast %4 : vector<1x32x256xf32> to vector<32x256xf32>
    %6 = vector.shape_cast %3 : vector<32x256xf32> to vector<1x32x256xf32>
    tpu.vector_store %arg5[%c0_4, %c0_5, %c0_6], %6 {strides = array<i32>} : memref<1x32x256xf32, #tpu.memory_space<vmem>>, vector<1x32x256xf32>,
    return
  }
  func.func @transform_0(%arg0: i32, %arg1: i32, %arg2: i32) -> (i32, i32, i32) {
    %c0_i32 = arith.constant 0 : i32
    %c0_i32_0 = arith.constant 0 : i32
    return %arg0, %c0_i32, %arg1 : i32, i32, i32
  }
  func.func @transform_1(%arg0: i32, %arg1: i32, %arg2: i32) -> (i32, i32) {
    %c0_i32 = arith.constant 0 : i32
    %c0_i32_0 = arith.constant 0 : i32
    return %arg2, %c0_i32 : i32, i32
  }
  func.func @transform_2(%arg0: i32, %arg1: i32, %arg2: i32) -> (i32, i32, i32) {
    %c0_i32 = arith.constant 0 : i32
    return %arg0, %arg2, %arg1 : i32, i32, i32
  }
}

</mosaic_0001>

<llo_original>
// kernel: tpu_custom_call.1
$region0: #{tpu_custom_call.1}
  #allocation0 [shape = 'u32[]', space=smem, size = 0x4, offset = 0x4, fixed_abs, tag = 'smem constant byte address 0x4 - core index']
  #allocation1 [shape = 'u32[72,128]{1,0:T(1,128)}', space=vmem, size = 0x9000, scoped, tag = 'internal scratch']
  %s0 = inlined_call_operand.hbm [shape: f32[2,32,256], index: 0, kind: input, shape index: {}]
  %s1 = inlined_call_operand.hbm [shape: f32[30,32], index: 1, kind: input, shape index: {}]
  %s2 = inlined_call_operand.vmem [shape: f32[2,30,256], index: 2, kind: output, shape index: {}]
  %s3 = sld [smem:[#allocation0]]
  $region49: #{tpu_custom_call.1} parent=0
    _
  %s5 = ssub.s32 1, %s3
  %s6 = scalar_select 0, %s5, %s3
  $region1: #{tpu_custom_call.1} parent=0
    #allocation2 [shape = 'u8[65536]{0}', space=vmem, size = 0x10000, scoped, tag = 'input window, operand 0']
    #allocation3 [shape = 's32[2]{0}', space=sflag, size = 0x8, scoped, tag = 'scoped memory for tpu_custom_call.1']
    #allocation4 [shape = 'u8[16384]{0}', space=vmem, size = 0x4000, scoped, tag = 'input window, operand 1, single buffered']
    #allocation5 [shape = 's32[1]{0}', space=sflag, size = 0x4, scoped, tag = 'scoped memory for tpu_custom_call.1']
    %7 = vsyncpa [#allocation3], 0
    %s8 = scalar_lea.sflag [#allocation3], 1
    %9 = vsyncpa %s8, 0
    %10 = vsyncpa [#allocation5], 0
    loop: start=0, step=1, limit=4
    $region2: #{tpu_custom_call.1} parent=1 // loop_pre_header
      _
    $region3: #{tpu_custom_call.1} parent=1 // loop_header
      %s12 = sphi 0, %s16
      %p13 = scmp.ge.s32.totalorder %s12, 4
      %s19 = sphi 0, %s38
      %s20 = sphi 0, %s34
      %s21 = sphi 0, %s30
      %s22 = sphi 0, %s19
      %s23 = sphi 0, %s20
      %s24 = sphi 0, %s21
      %s25 = sphi 0, %s22
      %s26 = sphi 0, %s23
      %s27 = sphi 0, %s24
      %s43 = sphi 0, %s45
      %s46 = sphi 0, %s43
      %s47 = sphi 0, %s46
      %s63 = sphi 0, %s47
      %s69 = sphi 0, %s71
      %s72 = sphi 0, %s69
      %s73 = sphi 0, %s72
      %s89 = sphi 0, %s73
      %s99 = sphi 0, %s101
      %s102 = sphi 0, %s99
      %s103 = sphi 0, %s102
      %s119 = sphi 0, %s103
    $region4: #{tpu_custom_call.1} parent=1 // loop_header_branch
      %15 = sbr.rel (%p13) target = $region8
    $region5: #{tpu_custom_call.1} parent=1 // loop_body
      %s17 = ssub.s32 %s12, 1
      %s18 = ssub.s32 %s12, 2
      %s28 = sadd.s32 1, %s21
      %p29 = scmp.ge.s32.totalorder %s28, 1
      %s30 = scalar_select %p29, 0, %s28
      %s31 = sadd.s32 1, %s20
      %s32 = scalar_select %p29, %s31, %s20
      %p33 = scmp.ge.s32.totalorder %s32, 1
      %s34 = scalar_select %p33, 0, %s32
      %s35 = sadd.s32 1, %s19
      %s36 = scalar_select %p33, %s35, %s19
      %p37 = scmp.ge.s32.totalorder %s36, 2
      %s38 = scalar_select %p37, 0, %s36
      %s39 = ssub.s32 %s19, %s38
      %s40 = ssub.s32 %s20, %s34
      %s41 = sor.u32 %s39, %s40
      %p42 = scmp.eq.s32.totalorder %s41, 0
      %s44 = sadd.s32 %s43, 1
      %s45 = scalar_select %p42, %s43, %s44
      %p48 = pneg %p42
      %p49 = scmp.eq.s32.totalorder %s12, 1
      %p50 = por %p48, %p49
      %p51 = scmp.ne.s32.totalorder %s43, %s46
      %p52 = scmp.eq.s32.totalorder %s12, 0
      %p53 = por %p51, %p52
      %p54 = scmp.ne.s32.totalorder %s43, %s46
      %p55 = scmp.eq.s32.totalorder %s17, 1
      %p56 = por %p54, %p55
      %p57 = scmp.ne.s32.totalorder %s46, %s47
      %p58 = scmp.eq.s32.totalorder %s17, 0
      %p59 = por %p57, %p58
      %p60 = scmp.ne.s32.totalorder %s46, %s47
      %p61 = scmp.eq.s32.totalorder %s18, 1
      %p62 = por %p60, %p61
      %p64 = scmp.ne.s32.totalorder %s47, %s63
      %p65 = scmp.eq.s32.totalorder %s18, 0
      %p66 = por %p64, %p65
      %s67 = ssub.s32 %s21, %s30
      %p68 = scmp.eq.s32.totalorder %s67, 0
      %s70 = sadd.s32 %s69, 1
      %s71 = scalar_select %p68, %s69, %s70
      %p74 = pneg %p68
      %p75 = scmp.eq.s32.totalorder %s12, 1
      %p76 = por %p74, %p75
      %p77 = scmp.ne.s32.totalorder %s69, %s72
      %p78 = scmp.eq.s32.totalorder %s12, 0
      %p79 = por %p77, %p78
      %p80 = scmp.ne.s32.totalorder %s69, %s72
      %p81 = scmp.eq.s32.totalorder %s17, 1
      %p82 = por %p80, %p81
      %p83 = scmp.ne.s32.totalorder %s72, %s73
      %p84 = scmp.eq.s32.totalorder %s17, 0
      %p85 = por %p83, %p84
      %p86 = scmp.ne.s32.totalorder %s72, %s73
      %p87 = scmp.eq.s32.totalorder %s18, 1
      %p88 = por %p86, %p87
      %p90 = scmp.ne.s32.totalorder %s73, %s89
      %p91 = scmp.eq.s32.totalorder %s18, 0
      %p92 = por %p90, %p91
      %s93 = ssub.s32 %s19, %s38
      %s94 = ssub.s32 %s21, %s30
      %s95 = sor.u32 %s93, %s94
      %s96 = ssub.s32 %s20, %s34
      %s97 = sor.u32 %s95, %s96
      %p98 = scmp.eq.s32.totalorder %s97, 0
      %s100 = sadd.s32 %s99, 1
      %s101 = scalar_select %p98, %s99, %s100
      %p104 = pneg %p98
      %p105 = scmp.eq.s32.totalorder %s12, 1
      %p106 = por %p104, %p105
      %p107 = scmp.ne.s32.totalorder %s99, %s102
      %p108 = scmp.eq.s32.totalorder %s12, 0
      %p109 = por %p107, %p108
      %p110 = scmp.ne.s32.totalorder %s99, %s102
      %p111 = scmp.eq.s32.totalorder %s17, 1
      %p112 = por %p110, %p111
      %p113 = scmp.ne.s32.totalorder %s102, %s103
      %p114 = scmp.eq.s32.totalorder %s17, 0
      %p115 = por %p113, %p114
      %p116 = scmp.ne.s32.totalorder %s102, %s103
      %p117 = scmp.eq.s32.totalorder %s18, 1
      %p118 = por %p116, %p117
      %p120 = scmp.ne.s32.totalorder %s103, %s119
      %p121 = scmp.eq.s32.totalorder %s18, 0
      %p122 = por %p120, %p121
      %p123 = scmp.le.s32.totalorder 1, %s12
      %p124 = scmp.lt.s32.totalorder %s12, 3
      %p125 = pnand %p123, %p124
      %p126 = pneg %p125
      // Predicated region
      $region9: #{tpu_custom_call.1} parent=5 // pred_check
        _
      $region10: #{tpu_custom_call.1} parent=5 // pred_check_branch
        %128 = sbr.rel (%p125) target = $region12
      $region11: #{tpu_custom_call.1} parent=5 // pred_region
        %s129 = ssub.s32 %s12, 1
        // Predicated region
        $region13: #{tpu_custom_call.1} parent=11 // pred_check
          %p130 = pneg %p85
        $region14: #{tpu_custom_call.1} parent=11 // pred_check_branch
          %132 = sbr.rel (%p130) target = $region16
        $region15: #{tpu_custom_call.1} parent=11 // pred_region
          %s133 = smul.u32 4, %s24
          %135 = vsyncadd [#allocation5], 0
          %s136 = smul.addr %s133, 8
          %s137 = scalar_lea.hbm %s1, %s136
          %s138 = sshll.u32 %s137, 4
          %s139 = int_to_ptr.hbm [resolvable:$true] %s138
          %s140 = sshll.u32 [#allocation4], 4
          %s141 = int_to_ptr.vmem [resolvable:$true] %s140
          %146 = dma.hbm_to_vmem [thread:$0]  %s139, 512, %s141, [#allocation5], 128, 128, 8
        $region16: #{tpu_custom_call.1} parent=11 // pred_fallthru
          _
      $region12: #{tpu_custom_call.1} parent=5 // pred_fallthru
        _
      %p147 = scmp.lt.s32.totalorder %s12, 2
      // Predicated region
      $region17: #{tpu_custom_call.1} parent=5 // pred_check
        %p148 = pneg %p147
      $region18: #{tpu_custom_call.1} parent=5 // pred_check_branch
        %150 = sbr.rel (%p148) target = $region20
      $region19: #{tpu_custom_call.1} parent=5 // pred_region
        // Predicated region
        $region21: #{tpu_custom_call.1} parent=19 // pred_check
          %p151 = pneg %p53
        $region22: #{tpu_custom_call.1} parent=19 // pred_check_branch
          %153 = sbr.rel (%p151) target = $region24
        $region23: #{tpu_custom_call.1} parent=19 // pred_region
          %s154 = sand.u32 %s43, 1
          %s155 = scalar_lea.sflag [#allocation3], %s154
          %s156 = sand.u32 %s43, 1
          %s157 = smul.addr %s156, 64
          %s158 = scalar_lea.vmem [#allocation2], %s157
          %s159 = smul.u32 2, %s20
          %161 = vsyncadd %s155, 0
          %s162 = smul.addr %s19, 8
          %s163 = sadd.s32 %s159, %s162
          %s164 = smul.addr %s163, 8
          %s165 = scalar_lea.hbm %s0, %s164
          %s166 = sshll.u32 %s165, 4
          %s167 = int_to_ptr.hbm [resolvable:$true] %s166
          %s168 = sshll.u32 %s158, 4
          %s169 = int_to_ptr.vmem [resolvable:$true] %s168
          %174 = dma.hbm_to_vmem [thread:$0]  %s167, 1024, %s169, %s155, 256, 256, 16
        $region24: #{tpu_custom_call.1} parent=19 // pred_fallthru
          _
      $region20: #{tpu_custom_call.1} parent=5 // pred_fallthru
        _
      %p175 = scmp.le.s32.totalorder 1, %s12
      %p176 = scmp.lt.s32.totalorder %s12, 3
      %p177 = pnand %p175, %p176
      %p178 = pneg %p177
      // Predicated region
      $region25: #{tpu_custom_call.1} parent=5 // pred_check
        _
      $region26: #{tpu_custom_call.1} parent=5 // pred_check_branch
        %180 = sbr.rel (%p177) target = $region28
      $region27: #{tpu_custom_call.1} parent=5 // pred_region
        %s181 = ssub.s32 %s12, 1
        %s182 = sand.u32 %s46, 1
        %s183 = scalar_lea.sflag [#allocation3], %s182
        %s184 = sand.u32 %s46, 1
        %s185 = smul.addr %s184, 64
        %s186 = scalar_lea.vmem [#allocation2], %s185
        // Predicated region
        $region29: #{tpu_custom_call.1} parent=27 // pred_check
          %p187 = pneg %p59
        $region30: #{tpu_custom_call.1} parent=27 // pred_check_branch
          %189 = sbr.rel (%p187) target = $region32
        $region31: #{tpu_custom_call.1} parent=27 // pred_region
          %191 = dma.done %s183, 1024
        $region32: #{tpu_custom_call.1} parent=27 // pred_fallthru
          _
        // Predicated region
        $region33: #{tpu_custom_call.1} parent=27 // pred_check
          %p192 = pneg %p85
        $region34: #{tpu_custom_call.1} parent=27 // pred_check_branch
          %194 = sbr.rel (%p192) target = $region36
        $region35: #{tpu_custom_call.1} parent=27 // pred_region
          %196 = dma.done [#allocation5], 512
        $region36: #{tpu_custom_call.1} parent=27 // pred_fallthru
          _
        %s197 = sand.u32 %s46, 1
        %s198 = scalar_lea.sflag [#allocation3], %s197
        %s199 = sand.u32 %s46, 1
        %s200 = smul.addr %s199, 64
        %s201 = scalar_lea.vmem [#allocation2], %s200
        %p202 = pneg %p59
        %p203 = pneg %p56
        %p204 = pneg %p85
        %p205 = pneg %p82
        %p206 = pneg %p115
        %p207 = pneg %p112
        %s208 = smul.u32 4, %s24
        %s209 = smul.u32 2, %s23
        %p210 = scmp.lt.s32.totalorder %s22, 1
        %s211 = scalar_select %p210, %s22, 1
        %p212 = scmp.lt.s32.totalorder %s208, 3
        %s213 = scalar_select %p212, %s208, 3
        %p214 = scmp.lt.s32.totalorder %s209, 1
        %s215 = scalar_select %p214, %s209, 1
        %s216 = smul.addr %s213, 2
        %s217 = sadd.s32 %s215, %s216
        %s218 = smul.addr %s211, 8
        %s219 = sadd.s32 %s217, %s218
        %s220 = smul.addr %s219, 8
        %s221 = scalar_lea.vmem %s2, %s220
        %s222 = smul.u32 2, %s23
        %s223 = smul.u32 4, %s24
        %s224 = smul.u32 4, %s24
        %s225 = smul.u32 2, %s23
        %p226 = scmp.lt.s32.totalorder %s22, 1
        %s227 = scalar_select %p226, %s22, 1
        %p228 = scmp.lt.s32.totalorder %s224, 3
        %s229 = scalar_select %p228, %s224, 3
        %p230 = scmp.lt.s32.totalorder %s225, 1
        %s231 = scalar_select %p230, %s225, 1
        %s232 = smul.addr %s229, 2
        %s233 = sadd.s32 %s231, %s232
        %s234 = smul.addr %s227, 8
        %s235 = sadd.s32 %s233, %s234
        %s236 = smul.addr %s235, 8
        %s237 = scalar_lea.vmem %s2, %s236
        %s238 = smul.u32 4, %s24
        %s239 = smul.u32 2, %s23
        %v240 = vld [vmem:[%s186] sm:$0xff]
        %v241 = vld [vmem:[%s186 + $0x8] sm:$0xff]
        %v242 = vld [vmem:[%s186 + $0x10] sm:$0xff]
        %v243 = vld [vmem:[%s186 + $0x18] sm:$0xff]
        %v244 = vld [vmem:[%s186 + $0x20] sm:$0xff]
        %v245 = vld [vmem:[%s186 + $0x28] sm:$0xff]
        %v246 = vld [vmem:[%s186 + $0x30] sm:$0xff]
        %v247 = vld [vmem:[%s186 + $0x38] sm:$0xff]
        %v248 = vld [vmem:[#allocation4] sm:$0xff]
        %v249 = vld [vmem:[#allocation4 + $0x8] sm:$0xff]
        %v250 = vld [vmem:[#allocation4 + $0x10] sm:$0xff]
        %v251 = vld [vmem:[#allocation4 + $0x18] sm:$0xff]
        %vm252 = vcmask 261120
        %v254 = vsel %vm252, %v248, 0
        %v257 = vsel %vm252, %v249, 0
        %v260 = vsel %vm252, %v250, 0
        %v263 = vsel %vm252, %v251, 0
        %265 = vmatpush.msra.mxu0 0.0
        %266 = vmatpush.msra.mxu0 0.0
        %267 = vmatpush.msra.mxu0 0.0
        %268 = vmatpush.msra.mxu0 0.0
        %269 = vmatpush.msra.mxu0 0.0
        %270 = vmatpush.msra.mxu0 0.0
        %271 = vmatpush.msra.mxu0 0.0
        %272 = vmatpush.msra.mxu0 0.0
        %273 = vmatpush.msra.mxu0 0.0
        %274 = vmatpush.msra.mxu0 0.0
        %275 = vmatpush.msra.mxu0 0.0
        %276 = vmatpush.msra.mxu0 0.0
        %277 = vmatpush.msra.mxu0 %v246
        %278 = vmatpush.msra.mxu0 %v244
        %279 = vmatpush.msra.mxu0 %v242
        %280 = vmatpush.msra.mxu0 %v240
        %281 = vmatmul.f32.gmra.mxu0 %v254
        %v282 = vpop.f32.mrf.mxu0
        %v283 = vadd.f32 0.0, %v282
        %284 = vmatmul.f32.gmra.mxu0 %v257
        %v285 = vpop.f32.mrf.mxu0
        %v286 = vadd.f32 0.0, %v285
        %287 = vmatmul.f32.gmra.mxu0 %v260
        %v288 = vpop.f32.mrf.mxu0
        %v289 = vadd.f32 0.0, %v288
        %290 = vmatmul.f32.gmra.mxu0 %v263
        %v291 = vpop.f32.mrf.mxu0
        %v292 = vadd.f32 0.0, %v291
        %293 = vdwg.mxu0
        %294 = vmatpush.msra.mxu0 0.0
        %295 = vmatpush.msra.mxu0 0.0
        %296 = vmatpush.msra.mxu0 0.0
        %297 = vmatpush.msra.mxu0 0.0
        %298 = vmatpush.msra.mxu0 0.0
        %299 = vmatpush.msra.mxu0 0.0
        %300 = vmatpush.msra.mxu0 0.0
        %301 = vmatpush.msra.mxu0 0.0
        %302 = vmatpush.msra.mxu0 0.0
        %303 = vmatpush.msra.mxu0 0.0
        %304 = vmatpush.msra.mxu0 0.0
        %305 = vmatpush.msra.mxu0 0.0
        %306 = vmatpush.msra.mxu0 %v247
        %307 = vmatpush.msra.mxu0 %v245
        %308 = vmatpush.msra.mxu0 %v243
        %309 = vmatpush.msra.mxu0 %v241
        %310 = vmatmul.f32.gmra.mxu0 %v254
        %v311 = vpop.f32.mrf.mxu0
        %v312 = vadd.f32 0.0, %v311
        %313 = vmatmul.f32.gmra.mxu0 %v257
        %v314 = vpop.f32.mrf.mxu0
        %v315 = vadd.f32 0.0, %v314
        %316 = vmatmul.f32.gmra.mxu0 %v260
        %v317 = vpop.f32.mrf.mxu0
        %v318 = vadd.f32 0.0, %v317
        %319 = vmatmul.f32.gmra.mxu0 %v263
        %v320 = vpop.f32.mrf.mxu0
        %v321 = vadd.f32 0.0, %v320
        %322 = vdwg.mxu0
        %323 = vst [vmem:[%s237] sm:$0xff] %v283
        %324 = vst [vmem:[%s237 + $0x8] sm:$0xff] %v312
        %325 = vst [vmem:[%s237 + $0x10] sm:$0xff] %v286
        %326 = vst [vmem:[%s237 + $0x18] sm:$0xff] %v315
        %327 = vst [vmem:[%s237 + $0x20] sm:$0xff] %v289
        %328 = vst [vmem:[%s237 + $0x28] sm:$0xff] %v318
        %329 = vst [vmem:[%s237 + $0x30] sm:$0xff] %v292
        %330 = vst [vmem:[%s237 + $0x38] sm:$0xff] %v321
        %s331 = smul.u32 4, %s24
        %s332 = smul.u32 2, %s23
        %p333 = scmp.lt.s32.totalorder %s22, 1
        %s334 = scalar_select %p333, %s22, 1
        %p335 = scmp.lt.s32.totalorder %s331, 3
        %s336 = scalar_select %p335, %s331, 3
        %p337 = scmp.lt.s32.totalorder %s332, 1
        %s338 = scalar_select %p337, %s332, 1
        %s339 = smul.addr %s336, 2
        %s340 = sadd.s32 %s338, %s339
        %s341 = smul.addr %s334, 8
        %s342 = sadd.s32 %s340, %s341
        %s343 = smul.addr %s342, 8
        %s344 = scalar_lea.vmem %s2, %s343
        // Predicated region
        $region37: #{tpu_custom_call.1} parent=27 // pred_check
          %p345 = pneg %p112
        $region38: #{tpu_custom_call.1} parent=27 // pred_check_branch
          %347 = sbr.rel (%p345) target = $region40
        $region39: #{tpu_custom_call.1} parent=27 // pred_region
          %s348 = smul.u32 4, %s24
          %s349 = smul.u32 2, %s23
        $region40: #{tpu_custom_call.1} parent=27 // pred_fallthru
          _
      $region28: #{tpu_custom_call.1} parent=5 // pred_fallthru
        _
      %p350 = scmp.le.s32.totalorder 2, %s12
      // Predicated region
      $region41: #{tpu_custom_call.1} parent=5 // pred_check
        %p351 = pneg %p350
      $region42: #{tpu_custom_call.1} parent=5 // pred_check_branch
        %353 = sbr.rel (%p351) target = $region44
      $region43: #{tpu_custom_call.1} parent=5 // pred_region
        %s354 = ssub.s32 %s12, 2
        // Predicated region
        $region45: #{tpu_custom_call.1} parent=43 // pred_check
          %p355 = pneg %p118
        $region46: #{tpu_custom_call.1} parent=43 // pred_check_branch
          %357 = sbr.rel (%p355) target = $region48
        $region47: #{tpu_custom_call.1} parent=43 // pred_region
          %s358 = smul.u32 4, %s27
          %s359 = smul.u32 2, %s26
          %p360 = scmp.lt.s32.totalorder %s25, 1
          %s361 = scalar_select %p360, %s25, 1
          %p362 = scmp.lt.s32.totalorder %s358, 3
          %s363 = scalar_select %p362, %s358, 3
          %p364 = scmp.lt.s32.totalorder %s359, 1
          %s365 = scalar_select %p364, %s359, 1
          %s366 = smul.addr %s363, 2
          %s367 = sadd.s32 %s365, %s366
          %s368 = smul.addr %s361, 8
          %s369 = sadd.s32 %s367, %s368
          %s370 = smul.addr %s369, 8
          %s371 = scalar_lea.vmem %s2, %s370
        $region48: #{tpu_custom_call.1} parent=43 // pred_fallthru
          _
      $region44: #{tpu_custom_call.1} parent=5 // pred_fallthru
        _
    $region6: #{tpu_custom_call.1} parent=1 // loop_footer
      %s16 = sadd.s32 1, %s12
    $region7: #{tpu_custom_call.1} parent=1 // loop_footer_branch
      %11 = sbr.rel target = $region3
    $region8: #{tpu_custom_call.1} parent=1 // loop_exit
      _
    %372 = vsyncpa [#allocation3], 1
    %s373 = scalar_lea.sflag [#allocation3], 1
    %374 = vsyncpa %s373, 1
    %375 = vsyncpa [#allocation5], 1

</llo_original>
